<compile_context>
chip_gen: v7x
topology: tpu7x:2x2x1
jax: 0.10.0
libtpu: 0.0.40
codegen_flags: <defaults>
</compile_context>

<pallas_src>
import jax
import jax.numpy as jnp
from jax.experimental import pallas as pl
from jax.experimental.pallas import tpu as pltpu


def _round_up(x, m):
    return ((x + m - 1) // m) * m


def critic_kernel(x_ref, w1_ref, w2h_ref, w2x_ref, w3_ref, bias_ref, q_ref):
    h1_dim = w1_ref.shape[1]                 # 128
    h2_dim = w2h_ref.shape[1]                # 64

    b1 = bias_ref[0:1, :h1_dim]              # (1, 128)  fc1 bias
    b2 = bias_ref[1:2, :h2_dim]              # (1, 64)   b2s + b2a
    b3 = bias_ref[2:3, :]                    # (1, 128)  fc3 bias replicated

    x = x_ref[...]                           # (bb, 64) = [sensor | goal | a]

    # fc1 + relu.  w1 was zero-padded 60->64 rows, so the goal/a lanes of x
    # contribute nothing here.
    h1 = jnp.dot(x, w1_ref[...], preferred_element_type=jnp.float32)
    h1 = jnp.maximum(h1 + b1, 0.0)           # (bb, 128), f32

    # fc2_s(concat(h1, goal)) + fc2_a(a)
    #   == h1 @ W2s[:128]  +  x @ W2x  + (b2s + b2a)
    # where W2x has W2s[128:130] / W2a in rows 60..63 and zeros elsewhere.
    h2 = jnp.dot(h1.astype(w2h_ref.dtype), w2h_ref[...],
                 preferred_element_type=jnp.float32)
    h2 = h2 + jnp.dot(x, w2x_ref[...], preferred_element_type=jnp.float32)
    h2 = jnp.maximum(h2 + b2, 0.0)           # (bb, 64), f32

    # fc3 against a (64,128) zero-padded weight: only output column 0 is real.
    qw = jnp.dot(h2.astype(w3_ref.dtype), w3_ref[...],
                 preferred_element_type=jnp.float32)   # (bb, 128)

    # Pack q lane-dense: transpose each 128-row block (XLU slot is idle here),
    # keep only row 0 (= column 0 of the block = the real q values), add b3.
    nchunks = q_ref.shape[0]                 # bb // 128
    for c in range(nchunks):
        blk = qw[c * 128:(c + 1) * 128, :]   # (128, 128), static slice
        q_ref[c:c + 1, :] = blk.T[0:1, :] + b3


def fold_params(params, dtype=jnp.float32):
    """One-time folding of the PyTorch-style params into kernel operands.

    Hoisted out of the forward path (pure overhead if done per call).
    Set dtype=jnp.bfloat16 to halve weight/activation HBM traffic (accumulation
    and bias/ReLU remain f32 inside the kernel).
    """
    w1, b1, w2s, b2s, w2a, b2a, w3, b3 = params
    S, H1 = w1.shape                      # 60, 128
    H2 = w2s.shape[1]                     # 64
    G = w2s.shape[0] - H1                 # 2 (goal)
    A = w2a.shape[0]                      # 2 (action)
    K = S + G + A                         # 64
    OUT_PAD = 128

    # fc1 weight padded so x = [sensor|goal|a] can feed it directly.
    w1p = jnp.zeros((K, H1), jnp.float32).at[:S, :].set(w1)
    # fc2_s split: h1 part ...
    w2h = w2s[:H1, :]
    # ... and goal part + fc2_a folded into one (64,64) weight on x.
    w2x = jnp.zeros((K, H2), jnp.float32)
    w2x = w2x.at[S:S + G, :].set(w2s[H1:, :])
    w2x = w2x.at[S + G:, :].set(w2a)
    # fc3 weight zero-padded to a lane-dense 128-wide output.
    w3p = jnp.pad(w3, ((0, 0), (0, OUT_PAD - w3.shape[1])))

    b2 = b2s + b2a
    bpack = jnp.stack([
        jnp.pad(b1, (0, OUT_PAD - b1.shape[0])),
        jnp.pad(b2, (0, OUT_PAD - H2)),
        jnp.broadcast_to(b3, (OUT_PAD,)),            # scalar fc3 bias, all lanes
    ], axis=0).astype(jnp.float32)                   # (3, 128)

    return (w1p.astype(dtype), w2h.astype(dtype), w2x.astype(dtype),
            w3p.astype(dtype), bpack)


def critic_forward(sensor, goal, a, folded, *, block_b=1024):
    """sensor: (B,60), goal: (B,2), a: (B,2). Returns q: (B,1)."""
    w1p, w2h, w2x, w3p, bpack = folded
    B = sensor.shape[0]
    K = w1p.shape[0]                       # 64
    OUT_PAD = bpack.shape[1]               # 128

    # Single activation operand (one DMA per grid step).
    x = jnp.concatenate([sensor, goal, a], axis=1).astype(w1p.dtype)  # (B, 64)

    # Batch tiling:
    #  * bb is a multiple of 128 (needed for the lane-dense output packing).
    #  * single grid step when the whole batch fits in one block_b tile;
    #  * otherwise bb is a multiple of 1024 so the packed output block keeps an
    #    8-aligned sublane dim, and the ("parallel",) grid has >=2 steps, which
    #    shards across both v7x TensorCores.
    Bp1 = _round_up(max(B, 1), 128)
    if Bp1 <= block_b:
        bb = Bp1
    else:
        bb = max(1024, (block_b // 1024) * 1024)
    Bp = _round_up(B, bb)
    if Bp != B:
        x = jnp.pad(x, ((0, Bp - B), (0, 0)))
    grid = (Bp // bb,)

    def const_spec(shape):
        return pl.BlockSpec(shape, lambda i: (0, 0))   # weights stay resident

    q_packed = pl.pallas_call(
        critic_kernel,
        out_shape=jax.ShapeDtypeStruct((Bp // 128, OUT_PAD), jnp.float32),
        grid=grid,
        in_specs=[
            pl.BlockSpec((bb, K), lambda i: (i, 0)),   # x        (bb, 64)
            const_spec(w1p.shape),                     # (64, 128)
            const_spec(w2h.shape),                     # (128, 64)
            const_spec(w2x.shape),                     # (64, 64)
            const_spec(w3p.shape),                     # (64, 128)
            const_spec(bpack.shape),                   # (3, 128)
        ],
        out_specs=pl.BlockSpec((bb // 128, OUT_PAD), lambda i: (i, 0)),
        compiler_params=pltpu.CompilerParams(
            dimension_semantics=("parallel",)),
    )(x, w1p, w2h, w2x, w3p, bpack)

    # (Bp//128, 128) row-major == q[0..Bp-1]; tiny slab, cheap reshape+slice.
    return q_packed.reshape(Bp, 1)[:B]


def init_params(key):
    """Deterministic PyTorch-Linear-style init: U(-1/sqrt(fan_in), 1/sqrt(fan_in))."""
    def linear(key, fan_in, fan_out):
        kw, kb = jax.random.split(key)
        bound = 1.0 / jnp.sqrt(jnp.float32(fan_in))
        w = jax.random.uniform(kw, (fan_in, fan_out), jnp.float32, -bound, bound)
        b = jax.random.uniform(kb, (fan_out,), jnp.float32, -bound, bound)
        return w, b

    k1, k2, k3, k4 = jax.random.split(key, 4)
    w1, b1 = linear(k1, 60, 128)     # fc1
    w2s, b2s = linear(k2, 130, 64)   # fc2_s
    w2a, b2a = linear(k3, 2, 64)     # fc2_a
    w3, b3 = linear(k4, 64, 1)       # fc3
    return (w1, b1, w2s, b2s, w2a, b2a, w3, b3)


def reference_forward(sensor, goal, a, params):
    (w1, b1, w2s, b2s, w2a, b2a, w3, b3) = params
    h1 = jax.nn.relu(sensor @ w1 + b1)
    h1c = jnp.concatenate([h1, goal], axis=1)
    h2 = jax.nn.relu(h1c @ w2s + b2s + a @ w2a + b2a)
    return h2 @ w3 + b3


if __name__ == "__main__":
    key = jax.random.PRNGKey(0)
    kp, kd = jax.random.split(key)

    params = init_params(kp)
    folded = fold_params(params)                     # one-time weight folding
    fwd = jax.jit(critic_forward, static_argnames=("block_b",))

    def check(B, seed_key):
        ks, kg, ka = jax.random.split(seed_key, 3)
        sensor = jax.random.normal(ks, (B, 60), jnp.float32)
        goal = jax.random.normal(kg, (B, 2), jnp.float32)
        a = jax.random.normal(ka, (B, 2), jnp.float32)
        q = jax.block_until_ready(fwd(sensor, goal, a, folded))
        q_ref = reference_forward(sensor, goal, a, params)
        assert q.shape == (B, 1)
        assert jnp.allclose(q, q_ref, atol=1e-4, rtol=1e-4), f"mismatch at B={B}"

    k_small, k_big = jax.random.split(kd)
    check(8, k_small)       # RL-style tiny batch (single grid step)
    check(2100, k_big)      # multi-step parallel grid + batch padding path

    print("KERNEL_OK")
</pallas_src>

<mosaic_0001>
module attributes {stable_mosaic.version = 11 : i64} {
  func.func @critic_kernel(%arg0: i32, %arg1: memref<128x64xf32, #tpu.memory_space<vmem>>, %arg2: memref<64x128xf32, #tpu.memory_space<vmem>>, %arg3: memref<128x64xf32, #tpu.memory_space<vmem>>, %arg4: memref<64x64xf32, #tpu.memory_space<vmem>>, %arg5: memref<64x128xf32, #tpu.memory_space<vmem>>, %arg6: memref<3x128xf32, #tpu.memory_space<vmem>>, %arg7: memref<1x128xf32, #tpu.memory_space<vmem>>) attributes {dimension_semantics = [#tpu.dimension_semantics<parallel>], iteration_bounds = array<i64: 1>, scalar_prefetch = 0 : i64, scratch_operands = 0 : i64, tpu.core_type = #tpu.core_type<tc>, window_params = [{transform_indices = @transform_0, window_bounds = array<i64: 128, 64>}, {pipeline_mode = #tpu.pipeline_mode<synchronous>, transform_indices = @transform_1, window_bounds = array<i64: 64, 128>}, {pipeline_mode = #tpu.pipeline_mode<synchronous>, transform_indices = @transform_2, window_bounds = array<i64: 128, 64>}, {pipeline_mode = #tpu.pipeline_mode<synchronous>, transform_indices = @transform_3, window_bounds = array<i64: 64, 64>}, {pipeline_mode = #tpu.pipeline_mode<synchronous>, transform_indices = @transform_4, window_bounds = array<i64: 64, 128>}, {pipeline_mode = #tpu.pipeline_mode<synchronous>, transform_indices = @transform_5, window_bounds = array<i64: 3, 128>}, {transform_indices = @transform_6, window_bounds = array<i64: 1, 128>}]} {
    %c0 = arith.constant 0 : index
    %c0_0 = arith.constant 0 : index
    %0 = vector.load %arg6[%c0, %c0_0] : memref<3x128xf32, #tpu.memory_space<vmem>>, vector<1x128xf32>
    %c1 = arith.constant 1 : index
    %c0_1 = arith.constant 0 : index
    %1 = vector.load %arg6[%c1, %c0_1] : memref<3x128xf32, #tpu.memory_space<vmem>>, vector<1x64xf32>
    %c2 = arith.constant 2 : index
    %c0_2 = arith.constant 0 : index
    %2 = vector.load %arg6[%c2, %c0_2] : memref<3x128xf32, #tpu.memory_space<vmem>>, vector<1x128xf32>
    %c0_3 = arith.constant 0 : index
    %c0_4 = arith.constant 0 : index
    %3 = vector.load %arg1[%c0_3, %c0_4] : memref<128x64xf32, #tpu.memory_space<vmem>>, vector<128x64xf32>
    %c0_5 = arith.constant 0 : index
    %c0_6 = arith.constant 0 : index
    %4 = vector.load %arg2[%c0_5, %c0_6] : memref<64x128xf32, #tpu.memory_space<vmem>>, vector<64x128xf32>
    %cst = arith.constant dense<0.000000e+00> : vector<128x128xf32>
    %5 = tpu.matmul %3, %4, %cst {dimension_numbers = #tpu.dot_dimension_numbers<[1], [0], [0], [1], [0, 0, 1, 1], [], []>} : vector<128x64xf32>, vector<64x128xf32>, vector<128x128xf32> -> vector<128x128xf32>
    %6 = vector.broadcast %0 : vector<1x128xf32> to vector<128x128xf32>
    %7 = arith.addf %5, %6 : vector<128x128xf32>
    %cst_7 = arith.constant 0.000000e+00 : f32
    %8 = vector.broadcast %cst_7 : f32 to vector<128x128xf32>
    %9 = arith.maximumf %7, %8 : vector<128x128xf32>
    %c0_8 = arith.constant 0 : index
    %c0_9 = arith.constant 0 : index
    %10 = vector.load %arg3[%c0_8, %c0_9] : memref<128x64xf32, #tpu.memory_space<vmem>>, vector<128x64xf32>
    %cst_10 = arith.constant dense<0.000000e+00> : vector<128x64xf32>
    %11 = tpu.matmul %9, %10, %cst_10 {dimension_numbers = #tpu.dot_dimension_numbers<[1], [0], [0], [1], [0, 0, 1, 1], [], []>} : vector<128x128xf32>, vector<128x64xf32>, vector<128x64xf32> -> vector<128x64xf32>
    %c0_11 = arith.constant 0 : index
    %c0_12 = arith.constant 0 : index
    %12 = vector.load %arg4[%c0_11, %c0_12] : memref<64x64xf32, #tpu.memory_space<vmem>>, vector<64x64xf32>
    %cst_13 = arith.constant dense<0.000000e+00> : vector<128x64xf32>
    %13 = tpu.matmul %3, %12, %cst_13 {dimension_numbers = #tpu.dot_dimension_numbers<[1], [0], [0], [1], [0, 0, 1, 1], [], []>} : vector<128x64xf32>, vector<64x64xf32>, vector<128x64xf32> -> vector<128x64xf32>
    %14 = arith.addf %11, %13 : vector<128x64xf32>
    %15 = vector.broadcast %1 : vector<1x64xf32> to vector<128x64xf32>
    %16 = arith.addf %14, %15 : vector<128x64xf32>
    %cst_14 = arith.constant 0.000000e+00 : f32
    %17 = vector.broadcast %cst_14 : f32 to vector<128x64xf32>
    %18 = arith.maximumf %16, %17 : vector<128x64xf32>
    %c0_15 = arith.constant 0 : index
    %c0_16 = arith.constant 0 : index
    %19 = vector.load %arg5[%c0_15, %c0_16] : memref<64x128xf32, #tpu.memory_space<vmem>>, vector<64x128xf32>
    %cst_17 = arith.constant dense<0.000000e+00> : vector<128x128xf32>
    %20 = tpu.matmul %18, %19, %cst_17 {dimension_numbers = #tpu.dot_dimension_numbers<[1], [0], [0], [1], [0, 0, 1, 1], [], []>} : vector<128x64xf32>, vector<64x128xf32>, vector<128x128xf32> -> vector<128x128xf32>
    %21 = tpu.transpose %20, [1, 0] : vector<128x128xf32> -> vector<128x128xf32>
    %22 = vector.extract_strided_slice %21 {offsets = [0, 0], sizes = [1, 128], strides = [1, 1]} : vector<128x128xf32> to vector<1x128xf32>
    %23 = arith.addf %22, %2 : vector<1x128xf32>
    %c0_18 = arith.constant 0 : index
    %c0_19 = arith.constant 0 : index
    %24 = vector.load %arg7[%c0_18, %c0_19] : memref<1x128xf32, #tpu.memory_space<vmem>>, vector<1x128xf32>
    tpu.vector_store %arg7[%c0_18, %c0_19], %23 {strides = array<i32>} : memref<1x128xf32, #tpu.memory_space<vmem>>, vector<1x128xf32>,
    return
  }
  func.func @transform_0(%arg0: i32) -> (i32, i32) {
    %c0_i32 = arith.constant 0 : i32
    %c0_i32_0 = arith.constant 0 : i32
    return %arg0, %c0_i32 : i32, i32
  }
  func.func @transform_1(%arg0: i32) -> (i32, i32) {
    %c0_i32 = arith.constant 0 : i32
    %c0_i32_0 = arith.constant 0 : i32
    %c0_i32_1 = arith.constant 0 : i32
    return %c0_i32, %c0_i32_0 : i32, i32
  }
  func.func @transform_2(%arg0: i32) -> (i32, i32) {
    %c0_i32 = arith.constant 0 : i32
    %c0_i32_0 = arith.constant 0 : i32
    %c0_i32_1 = arith.constant 0 : i32
    return %c0_i32, %c0_i32_0 : i32, i32
  }
  func.func @transform_3(%arg0: i32) -> (i32, i32) {
    %c0_i32 = arith.constant 0 : i32
    %c0_i32_0 = arith.constant 0 : i32
    %c0_i32_1 = arith.constant 0 : i32
    return %c0_i32, %c0_i32_0 : i32, i32
  }
  func.func @transform_4(%arg0: i32) -> (i32, i32) {
    %c0_i32 = arith.constant 0 : i32
    %c0_i32_0 = arith.constant 0 : i32
    %c0_i32_1 = arith.constant 0 : i32
    return %c0_i32, %c0_i32_0 : i32, i32
  }
  func.func @transform_5(%arg0: i32) -> (i32, i32) {
    %c0_i32 = arith.constant 0 : i32
    %c0_i32_0 = arith.constant 0 : i32
    %c0_i32_1 = arith.constant 0 : i32
    return %c0_i32, %c0_i32_0 : i32, i32
  }
  func.func @transform_6(%arg0: i32) -> (i32, i32) {
    %c0_i32 = arith.constant 0 : i32
    %c0_i32_0 = arith.constant 0 : i32
    return %arg0, %c0_i32 : i32, i32
  }
}

</mosaic_0001>

<llo_original>
// kernel: critic_forward.1
$region0: #{critic_forward.1}
  #allocation0 [shape = 'u32[]', space=smem, size = 0x4, offset = 0x4, fixed_abs, tag = 'smem constant byte address 0x4 - core index']
  #allocation1 [shape = 'u32[144,128]{1,0:T(1,128)}', space=vmem, size = 0x12000, scoped, tag = 'internal scratch']
  %s0 = inlined_call_operand.vmem [shape: f32[128,64], index: 0, kind: input, shape index: {}]
  %s1 = inlined_call_operand.vmem [shape: f32[64,128], index: 1, kind: input, shape index: {}]
  %s2 = inlined_call_operand.vmem [shape: f32[128,64], index: 2, kind: input, shape index: {}]
  %s3 = inlined_call_operand.vmem [shape: f32[64,64], index: 3, kind: input, shape index: {}]
  %s4 = inlined_call_operand.vmem [shape: f32[64,128], index: 4, kind: input, shape index: {}]
  %s5 = inlined_call_operand.vmem [shape: f32[3,128], index: 5, kind: input, shape index: {}]
  %s6 = inlined_call_operand.vmem [shape: f32[1,128], index: 6, kind: output, shape index: {}]
  %s7 = sld [smem:[#allocation0]]
  $region34: #{critic_forward.1} parent=0
    _
  %s9 = ssub.s32 1, %s7
  %s10 = scalar_select 0, %s9, %s7
  // Predicated region
  $region2: #{critic_forward.1} parent=0 // pred_check
    _
  $region3: #{critic_forward.1} parent=0 // pred_check_branch
    %12 = sbr.rel (0) target = $region5
  $region4: #{critic_forward.1} parent=0 // pred_region
    _
  $region5: #{critic_forward.1} parent=0 // pred_fallthru
    _
  // Predicated region
  $region6: #{critic_forward.1} parent=0 // pred_check
    _
  $region7: #{critic_forward.1} parent=0 // pred_check_branch
    %14 = sbr.rel (0) target = $region9
  $region8: #{critic_forward.1} parent=0 // pred_region
    _
  $region9: #{critic_forward.1} parent=0 // pred_fallthru
    _
  // Predicated region
  $region10: #{critic_forward.1} parent=0 // pred_check
    _
  $region11: #{critic_forward.1} parent=0 // pred_check_branch
    %16 = sbr.rel (0) target = $region13
  $region12: #{critic_forward.1} parent=0 // pred_region
    _
  $region13: #{critic_forward.1} parent=0 // pred_fallthru
    _
  // Predicated region
  $region14: #{critic_forward.1} parent=0 // pred_check
    _
  $region15: #{critic_forward.1} parent=0 // pred_check_branch
    %18 = sbr.rel (0) target = $region17
  $region16: #{critic_forward.1} parent=0 // pred_region
    _
  $region17: #{critic_forward.1} parent=0 // pred_fallthru
    _
  // Predicated region
  $region18: #{critic_forward.1} parent=0 // pred_check
    _
  $region19: #{critic_forward.1} parent=0 // pred_check_branch
    %20 = sbr.rel (0) target = $region21
  $region20: #{critic_forward.1} parent=0 // pred_region
    _
  $region21: #{critic_forward.1} parent=0 // pred_fallthru
    _
  // Predicated region
  $region22: #{critic_forward.1} parent=0 // pred_check
    _
  $region23: #{critic_forward.1} parent=0 // pred_check_branch
    %22 = sbr.rel (0) target = $region25
  $region24: #{critic_forward.1} parent=0 // pred_region
    _
  $region25: #{critic_forward.1} parent=0 // pred_fallthru
    _
  %v23 = vld [vmem:[%s5] sm:$0x1]
  %v24 = vld [vmem:[%s5 + $0x1] sm:$0x1]
  %v25 = vld [vmem:[%s5 + $0x2] sm:$0x1]
  %v26 = vld [vmem:[%s0] sm:$0xff]
  %v27 = vld [vmem:[%s0 + $0x8] sm:$0xff]
  %v28 = vld [vmem:[%s0 + $0x10] sm:$0xff]
  %v29 = vld [vmem:[%s0 + $0x18] sm:$0xff]
  %v30 = vld [vmem:[%s0 + $0x20] sm:$0xff]
  %v31 = vld [vmem:[%s0 + $0x28] sm:$0xff]
  %v32 = vld [vmem:[%s0 + $0x30] sm:$0xff]
  %v33 = vld [vmem:[%s0 + $0x38] sm:$0xff]
  %v34 = vld [vmem:[%s0 + $0x40] sm:$0xff]
  %v35 = vld [vmem:[%s0 + $0x48] sm:$0xff]
  %v36 = vld [vmem:[%s0 + $0x50] sm:$0xff]
  %v37 = vld [vmem:[%s0 + $0x58] sm:$0xff]
  %v38 = vld [vmem:[%s0 + $0x60] sm:$0xff]
  %v39 = vld [vmem:[%s0 + $0x68] sm:$0xff]
  %v40 = vld [vmem:[%s0 + $0x70] sm:$0xff]
  %v41 = vld [vmem:[%s0 + $0x78] sm:$0xff]
  %v42 = vld [vmem:[%s1] sm:$0xff]
  %v43 = vld [vmem:[%s1 + $0x8] sm:$0xff]
  %v44 = vld [vmem:[%s1 + $0x10] sm:$0xff]
  %v45 = vld [vmem:[%s1 + $0x18] sm:$0xff]
  %v46 = vld [vmem:[%s1 + $0x20] sm:$0xff]
  %v47 = vld [vmem:[%s1 + $0x28] sm:$0xff]
  %v48 = vld [vmem:[%s1 + $0x30] sm:$0xff]
  %v49 = vld [vmem:[%s1 + $0x38] sm:$0xff]
  %v50 = vlaneseq
  %v51 = vshrl.u32 %v50, 7
  %v52 = vsub.s32 0, %v51
  %v53 = vrot.slane %v23, %v52
  %vm54 = vcmask 523264
  %v56 = vsel %vm54, %v26, 0
  %v59 = vsel %vm54, %v27, 0
  %v62 = vsel %vm54, %v28, 0
  %v65 = vsel %vm54, %v29, 0
  %v68 = vsel %vm54, %v30, 0
  %v71 = vsel %vm54, %v31, 0
  %v74 = vsel %vm54, %v32, 0
  %v77 = vsel %vm54, %v33, 0
  %v80 = vsel %vm54, %v34, 0
  %v83 = vsel %vm54, %v35, 0
  %v86 = vsel %vm54, %v36, 0
  %v89 = vsel %vm54, %v37, 0
  %v92 = vsel %vm54, %v38, 0
  %v95 = vsel %vm54, %v39, 0
  %v98 = vsel %vm54, %v40, 0
  %v101 = vsel %vm54, %v41, 0
  %103 = vmatprep.subr.mxu0 0.0
  %104 = vmatpush1.msra.mxu0 %v42
  %105 = vmatprep.subr.mxu0 0.0
  %106 = vmatpush1.msra.mxu0 %v43
  %107 = vmatprep.subr.mxu0 0.0
  %108 = vmatpush1.msra.mxu0 %v44
  %109 = vmatprep.subr.mxu0 0.0
  %110 = vmatpush1.msra.mxu0 %v45
  %111 = vmatprep.subr.mxu0 0.0
  %112 = vmatpush1.msra.mxu0 %v46
  %113 = vmatprep.subr.mxu0 0.0
  %114 = vmatpush1.msra.mxu0 %v47
  %115 = vmatprep.subr.mxu0 0.0
  %116 = vmatpush1.msra.mxu0 %v48
  %117 = vmatprep.subr.mxu0 0.0
  %118 = vmatpush1.msra.mxu0 %v49
  %119 = vmatprep.subr.mxu0 0.0
  %120 = vmatpush1.msra.mxu0 0.0
  %121 = vmatprep.subr.mxu0 0.0
  %122 = vmatpush1.msra.mxu0 0.0
  %123 = vmatprep.subr.mxu0 0.0
  %124 = vmatpush1.msra.mxu0 0.0
  %125 = vmatprep.subr.mxu0 0.0
  %126 = vmatpush1.msra.mxu0 0.0
  %127 = vmatprep.subr.mxu0 0.0
  %128 = vmatpush1.msra.mxu0 0.0
  %129 = vmatprep.subr.mxu0 0.0
  %130 = vmatpush1.msra.mxu0 0.0
  %131 = vmatprep.subr.mxu0 0.0
  %132 = vmatpush1.msra.mxu0 0.0
  %133 = vmatprep.subr.mxu0 0.0
  %134 = vmatpush1.msra.mxu0 0.0
  %135 = vmatprep.subr.mxu0 0.0
  %136 = vmatpush1.msra.mxu0 0.0
  %137 = vmatprep.subr.mxu0 0.0
  %138 = vmatpush1.msra.mxu0 0.0
  %139 = vmatprep.subr.mxu0 0.0
  %140 = vmatpush1.msra.mxu0 0.0
  %141 = vmatprep.subr.mxu0 0.0
  %142 = vmatpush1.msra.mxu0 0.0
  %143 = vmatprep.subr.mxu0 0.0
  %144 = vmatpush1.msra.mxu0 0.0
  %145 = vmatprep.subr.mxu0 0.0
  %146 = vmatpush1.msra.mxu0 0.0
  %147 = vmatprep.subr.mxu0 0.0
  %148 = vmatpush1.msra.mxu0 0.0
  %149 = vmatprep.subr.mxu0 0.0
  %150 = vmatpush1.msra.mxu0 0.0
  %151 = vmatprep.subr.mxu0 0.0
  %152 = vmatpush1.msra.mxu0 0.0
  %153 = vmatprep.subr.mxu0 0.0
  %154 = vmatpush1.msra.mxu0 0.0
  %155 = vmatprep.subr.mxu0 0.0
  %156 = vmatpush1.msra.mxu0 0.0
  %157 = vmatprep.subr.mxu0 0.0
  %158 = vmatpush1.msra.mxu0 0.0
  %159 = vmatprep.subr.mxu0 0.0
  %160 = vmatpush1.msra.mxu0 0.0
  %161 = vmatprep.subr.mxu0 0.0
  %162 = vmatpush1.msra.mxu0 0.0
  %163 = vmatprep.subr.mxu0 0.0
  %164 = vmatpush1.msra.mxu0 0.0
  %165 = vmatprep.subr.mxu0 0.0
  %166 = vmatpush1.msra.mxu0 0.0
  %167 = vmatprep.mubr.f32.mxu0 0.0
  %168 = vmatmul.mubr.f32.gmra.mrb[0].mxu0 %v56
  %v169 = vpop.f32.mrb[0].mxu0
  %v170 = vadd.f32 %v53, %v169
  %v171 = vpop.f32.mrb[0].mxu0
  %172 = vmatprep.mubr.f32.mxu0 0.0
  %173 = vmatmul.mubr.f32.gmra.mrb[0].mxu0 %v59
  %v174 = vpop.f32.mrb[0].mxu0
  %v175 = vadd.f32 %v53, %v174
  %v176 = vpop.f32.mrb[0].mxu0
  %177 = vmatprep.mubr.f32.mxu0 0.0
  %178 = vmatmul.mubr.f32.gmra.mrb[0].mxu0 %v62
  %v179 = vpop.f32.mrb[0].mxu0
  %v180 = vadd.f32 %v53, %v179
  %v181 = vpop.f32.mrb[0].mxu0
  %182 = vmatprep.mubr.f32.mxu0 0.0
  %183 = vmatmul.mubr.f32.gmra.mrb[0].mxu0 %v65
  %v184 = vpop.f32.mrb[0].mxu0
  %v185 = vadd.f32 %v53, %v184
  %v186 = vpop.f32.mrb[0].mxu0
  %187 = vmatprep.mubr.f32.mxu0 0.0
  %188 = vmatmul.mubr.f32.gmra.mrb[0].mxu0 %v68
  %v189 = vpop.f32.mrb[0].mxu0
  %v190 = vadd.f32 %v53, %v189
  %v191 = vpop.f32.mrb[0].mxu0
  %192 = vmatprep.mubr.f32.mxu0 0.0
  %193 = vmatmul.mubr.f32.gmra.mrb[0].mxu0 %v71
  %v194 = vpop.f32.mrb[0].mxu0
  %v195 = vadd.f32 %v53, %v194
  %v196 = vpop.f32.mrb[0].mxu0
  %197 = vmatprep.mubr.f32.mxu0 0.0
  %198 = vmatmul.mubr.f32.gmra.mrb[0].mxu0 %v74
  %v199 = vpop.f32.mrb[0].mxu0
  %v200 = vadd.f32 %v53, %v199
  %v201 = vpop.f32.mrb[0].mxu0
  %202 = vmatprep.mubr.f32.mxu0 0.0
  %203 = vmatmul.mubr.f32.gmra.mrb[0].mxu0 %v77
  %v204 = vpop.f32.mrb[0].mxu0
  %v205 = vadd.f32 %v53, %v204
  %v206 = vpop.f32.mrb[0].mxu0
  %207 = vmatprep.mubr.f32.mxu0 0.0
  %208 = vmatmul.mubr.f32.gmra.mrb[0].mxu0 %v80
  %v209 = vpop.f32.mrb[0].mxu0
  %v210 = vadd.f32 %v53, %v209
  %v211 = vpop.f32.mrb[0].mxu0
  %212 = vmatprep.mubr.f32.mxu0 0.0
  %213 = vmatmul.mubr.f32.gmra.mrb[0].mxu0 %v83
  %v214 = vpop.f32.mrb[0].mxu0
  %v215 = vadd.f32 %v53, %v214
  %v216 = vpop.f32.mrb[0].mxu0
  %217 = vmatprep.mubr.f32.mxu0 0.0
  %218 = vmatmul.mubr.f32.gmra.mrb[0].mxu0 %v86
  %v219 = vpop.f32.mrb[0].mxu0
  %v220 = vadd.f32 %v53, %v219
  %v221 = vpop.f32.mrb[0].mxu0
  %222 = vmatprep.mubr.f32.mxu0 0.0
  %223 = vmatmul.mubr.f32.gmra.mrb[0].mxu0 %v89
  %v224 = vpop.f32.mrb[0].mxu0
  %v225 = vadd.f32 %v53, %v224
  %v226 = vpop.f32.mrb[0].mxu0
  %227 = vmatprep.mubr.f32.mxu0 0.0
  %228 = vmatmul.mubr.f32.gmra.mrb[0].mxu0 %v92
  %v229 = vpop.f32.mrb[0].mxu0
  %v230 = vadd.f32 %v53, %v229
  %v231 = vpop.f32.mrb[0].mxu0
  %232 = vmatprep.mubr.f32.mxu0 0.0
  %233 = vmatmul.mubr.f32.gmra.mrb[0].mxu0 %v95
  %v234 = vpop.f32.mrb[0].mxu0
  %v235 = vadd.f32 %v53, %v234
  %v236 = vpop.f32.mrb[0].mxu0
  %237 = vmatprep.mubr.f32.mxu0 0.0
  %238 = vmatmul.mubr.f32.gmra.mrb[0].mxu0 %v98
  %v239 = vpop.f32.mrb[0].mxu0
  %v240 = vadd.f32 %v53, %v239
  %v241 = vpop.f32.mrb[0].mxu0
  %242 = vmatprep.mubr.f32.mxu0 0.0
  %243 = vmatmul.mubr.f32.gmra.mrb[0].mxu0 %v101
  %v244 = vpop.f32.mrb[0].mxu0
  %v245 = vadd.f32 %v53, %v244
  %v246 = vpop.f32.mrb[0].mxu0
  %247 = vdwg.mxu0
  %v248 = vmax.f32 %v170, 0.0
  %v249 = vmax.f32 %v175, 0.0
  %v250 = vmax.f32 %v180, 0.0
  %v251 = vmax.f32 %v185, 0.0
  %v252 = vmax.f32 %v190, 0.0
  %v253 = vmax.f32 %v195, 0.0
  %v254 = vmax.f32 %v200, 0.0
  %v255 = vmax.f32 %v205, 0.0
  %v256 = vmax.f32 %v210, 0.0
  %v257 = vmax.f32 %v215, 0.0
  %v258 = vmax.f32 %v220, 0.0
  %v259 = vmax.f32 %v225, 0.0
  %v260 = vmax.f32 %v230, 0.0
  %v261 = vmax.f32 %v235, 0.0
  %v262 = vmax.f32 %v240, 0.0
  %v263 = vmax.f32 %v245, 0.0
  %v264 = vld [vmem:[%s2] sm:$0xff]
  %v265 = vld [vmem:[%s2 + $0x8] sm:$0xff]
  %v266 = vld [vmem:[%s2 + $0x10] sm:$0xff]
  %v267 = vld [vmem:[%s2 + $0x18] sm:$0xff]
  %v268 = vld [vmem:[%s2 + $0x20] sm:$0xff]
  %v269 = vld [vmem:[%s2 + $0x28] sm:$0xff]
  %v270 = vld [vmem:[%s2 + $0x30] sm:$0xff]
  %v271 = vld [vmem:[%s2 + $0x38] sm:$0xff]
  %v272 = vld [vmem:[%s2 + $0x40] sm:$0xff]
  %v273 = vld [vmem:[%s2 + $0x48] sm:$0xff]
  %v274 = vld [vmem:[%s2 + $0x50] sm:$0xff]
  %v275 = vld [vmem:[%s2 + $0x58] sm:$0xff]
  %v276 = vld [vmem:[%s2 + $0x60] sm:$0xff]
  %v277 = vld [vmem:[%s2 + $0x68] sm:$0xff]
  %v278 = vld [vmem:[%s2 + $0x70] sm:$0xff]
  %v279 = vld [vmem:[%s2 + $0x78] sm:$0xff]
  %v280 = vld [vmem:[%s3] sm:$0xff]
  %v281 = vld [vmem:[%s3 + $0x8] sm:$0xff]
  %v282 = vld [vmem:[%s3 + $0x10] sm:$0xff]
  %v283 = vld [vmem:[%s3 + $0x18] sm:$0xff]
  %v284 = vld [vmem:[%s3 + $0x20] sm:$0xff]
  %v285 = vld [vmem:[%s3 + $0x28] sm:$0xff]
  %v286 = vld [vmem:[%s3 + $0x30] sm:$0xff]
  %v287 = vld [vmem:[%s3 + $0x38] sm:$0xff]
  %288 = vmatprep.subr.mxu0 0.0
  %289 = vmatpush1.msra.mxu0 %v280
  %290 = vmatprep.subr.mxu0 0.0
  %291 = vmatpush1.msra.mxu0 %v281
  %292 = vmatprep.subr.mxu0 0.0
  %293 = vmatpush1.msra.mxu0 %v282
  %294 = vmatprep.subr.mxu0 0.0
  %295 = vmatpush1.msra.mxu0 %v283
  %296 = vmatprep.subr.mxu0 0.0
  %297 = vmatpush1.msra.mxu0 %v284
  %298 = vmatprep.subr.mxu0 0.0
  %299 = vmatpush1.msra.mxu0 %v285
  %300 = vmatprep.subr.mxu0 0.0
  %301 = vmatpush1.msra.mxu0 %v286
  %302 = vmatprep.subr.mxu0 0.0
  %303 = vmatpush1.msra.mxu0 %v287
  %304 = vmatprep.subr.mxu0 0.0
  %305 = vmatpush1.msra.mxu0 0.0
  %306 = vmatprep.subr.mxu0 0.0
  %307 = vmatpush1.msra.mxu0 0.0
  %308 = vmatprep.subr.mxu0 0.0
  %309 = vmatpush1.msra.mxu0 0.0
  %310 = vmatprep.subr.mxu0 0.0
  %311 = vmatpush1.msra.mxu0 0.0
  %312 = vmatprep.subr.mxu0 0.0
  %313 = vmatpush1.msra.mxu0 0.0
  %314 = vmatprep.subr.mxu0 0.0
  %315 = vmatpush1.msra.mxu0 0.0
  %316 = vmatprep.subr.mxu0 0.0
  %317 = vmatpush1.msra.mxu0 0.0
  %318 = vmatprep.subr.mxu0 0.0
  %319 = vmatpush1.msra.mxu0 0.0
  %320 = vmatprep.subr.mxu0 0.0
  %321 = vmatpush1.msra.mxu0 0.0
  %322 = vmatprep.subr.mxu0 0.0
  %323 = vmatpush1.msra.mxu0 0.0
  %324 = vmatprep.subr.mxu0 0.0
  %325 = vmatpush1.msra.mxu0 0.0
  %326 = vmatprep.subr.mxu0 0.0
  %327 = vmatpush1.msra.mxu0 0.0
  %328 = vmatprep.subr.mxu0 0.0
  %329 = vmatpush1.msra.mxu0 0.0
  %330 = vmatprep.subr.mxu0 0.0
  %331 = vmatpush1.msra.mxu0 0.0
  %332 = vmatprep.subr.mxu0 0.0
  %333 = vmatpush1.msra.mxu0 0.0
  %334 = vmatprep.subr.mxu0 0.0
  %335 = vmatpush1.msra.mxu0 0.0
  %336 = vmatprep.subr.mxu0 0.0
  %337 = vmatpush1.msra.mxu0 0.0
  %338 = vmatprep.subr.mxu0 0.0
  %339 = vmatpush1.msra.mxu0 0.0
  %340 = vmatprep.subr.mxu0 0.0
  %341 = vmatpush1.msra.mxu0 0.0
  %342 = vmatprep.subr.mxu0 0.0
  %343 = vmatpush1.msra.mxu0 0.0
  %344 = vmatprep.subr.mxu0 0.0
  %345 = vmatpush1.msra.mxu0 0.0
  %346 = vmatprep.subr.mxu0 0.0
  %347 = vmatpush1.msra.mxu0 0.0
  %348 = vmatprep.subr.mxu0 0.0
  %349 = vmatpush1.msra.mxu0 0.0
  %350 = vmatprep.subr.mxu0 0.0
  %351 = vmatpush1.msra.mxu0 0.0
  %352 = vmatprep.mubr.f32.mxu0 0.0
  %353 = vmatmul.mubr.f32.gmra.mrb[0].mxu0 %v56
  %v354 = vpop.f32.mrb[0].mxu0
  %v355 = vadd.f32 0.0, %v354
  %v356 = vpop.f32.mrb[0].mxu0
  %357 = vmatprep.mubr.f32.mxu0 0.0
  %358 = vmatmul.mubr.f32.gmra.mrb[0].mxu0 %v59
  %v359 = vpop.f32.mrb[0].mxu0
  %v360 = vadd.f32 0.0, %v359
  %v361 = vpop.f32.mrb[0].mxu0
  %362 = vmatprep.mubr.f32.mxu0 0.0
  %363 = vmatmul.mubr.f32.gmra.mrb[0].mxu0 %v62
  %v364 = vpop.f32.mrb[0].mxu0
  %v365 = vadd.f32 0.0, %v364
  %v366 = vpop.f32.mrb[0].mxu0
  %367 = vmatprep.mubr.f32.mxu0 0.0
  %368 = vmatmul.mubr.f32.gmra.mrb[0].mxu0 %v65
  %v369 = vpop.f32.mrb[0].mxu0
  %v370 = vadd.f32 0.0, %v369
  %v371 = vpop.f32.mrb[0].mxu0
  %372 = vmatprep.mubr.f32.mxu0 0.0
  %373 = vmatmul.mubr.f32.gmra.mrb[0].mxu0 %v68
  %v374 = vpop.f32.mrb[0].mxu0
  %v375 = vadd.f32 0.0, %v374
  %v376 = vpop.f32.mrb[0].mxu0
  %377 = vmatprep.mubr.f32.mxu0 0.0
  %378 = vmatmul.mubr.f32.gmra.mrb[0].mxu0 %v71
  %v379 = vpop.f32.mrb[0].mxu0
  %v380 = vadd.f32 0.0, %v379
  %v381 = vpop.f32.mrb[0].mxu0
  %382 = vmatprep.mubr.f32.mxu0 0.0
  %383 = vmatmul.mubr.f32.gmra.mrb[0].mxu0 %v74
  %v384 = vpop.f32.mrb[0].mxu0
  %v385 = vadd.f32 0.0, %v384
  %v386 = vpop.f32.mrb[0].mxu0
  %387 = vmatprep.mubr.f32.mxu0 0.0
  %388 = vmatmul.mubr.f32.gmra.mrb[0].mxu0 %v77
  %v389 = vpop.f32.mrb[0].mxu0
  %v390 = vadd.f32 0.0, %v389
  %v391 = vpop.f32.mrb[0].mxu0
  %392 = vmatprep.mubr.f32.mxu0 0.0
  %393 = vmatmul.mubr.f32.gmra.mrb[0].mxu0 %v80
  %v394 = vpop.f32.mrb[0].mxu0
  %v395 = vadd.f32 0.0, %v394
  %v396 = vpop.f32.mrb[0].mxu0
  %397 = vmatprep.mubr.f32.mxu0 0.0
  %398 = vmatmul.mubr.f32.gmra.mrb[0].mxu0 %v83
  %v399 = vpop.f32.mrb[0].mxu0
  %v400 = vadd.f32 0.0, %v399
  %v401 = vpop.f32.mrb[0].mxu0
  %402 = vmatprep.mubr.f32.mxu0 0.0
  %403 = vmatmul.mubr.f32.gmra.mrb[0].mxu0 %v86
  %v404 = vpop.f32.mrb[0].mxu0
  %v405 = vadd.f32 0.0, %v404
  %v406 = vpop.f32.mrb[0].mxu0
  %407 = vmatprep.mubr.f32.mxu0 0.0
  %408 = vmatmul.mubr.f32.gmra.mrb[0].mxu0 %v89
  %v409 = vpop.f32.mrb[0].mxu0
  %v410 = vadd.f32 0.0, %v409
  %v411 = vpop.f32.mrb[0].mxu0
  %412 = vmatprep.mubr.f32.mxu0 0.0
  %413 = vmatmul.mubr.f32.gmra.mrb[0].mxu0 %v92
  %v414 = vpop.f32.mrb[0].mxu0
  %v415 = vadd.f32 0.0, %v414
  %v416 = vpop.f32.mrb[0].mxu0
  %417 = vmatprep.mubr.f32.mxu0 0.0
  %418 = vmatmul.mubr.f32.gmra.mrb[0].mxu0 %v95
  %v419 = vpop.f32.mrb[0].mxu0
  %v420 = vadd.f32 0.0, %v419
  %v421 = vpop.f32.mrb[0].mxu0
  %422 = vmatprep.mubr.f32.mxu0 0.0
  %423 = vmatmul.mubr.f32.gmra.mrb[0].mxu0 %v98
  %v424 = vpop.f32.mrb[0].mxu0
  %v425 = vadd.f32 0.0, %v424
  %v426 = vpop.f32.mrb[0].mxu0
  %427 = vmatprep.mubr.f32.mxu0 0.0
  %428 = vmatmul.mubr.f32.gmra.mrb[0].mxu0 %v101
  %v429 = vpop.f32.mrb[0].mxu0
  %v430 = vadd.f32 0.0, %v429
  %v431 = vpop.f32.mrb[0].mxu0
  %432 = vdwg.mxu0
  %433 = vmatprep.subr.mxu0 0.0
  %434 = vmatpush1.msra.mxu0 %v264
  %435 = vmatprep.subr.mxu0 0.0
  %436 = vmatpush1.msra.mxu0 %v265
  %437 = vmatprep.subr.mxu0 0.0
  %438 = vmatpush1.msra.mxu0 %v266
  %439 = vmatprep.subr.mxu0 0.0
  %440 = vmatpush1.msra.mxu0 %v267
  %441 = vmatprep.subr.mxu0 0.0
  %442 = vmatpush1.msra.mxu0 %v268
  %443 = vmatprep.subr.mxu0 0.0
  %444 = vmatpush1.msra.mxu0 %v269
  %445 = vmatprep.subr.mxu0 0.0
  %446 = vmatpush1.msra.mxu0 %v270
  %447 = vmatprep.subr.mxu0 0.0
  %448 = vmatpush1.msra.mxu0 %v271
  %449 = vmatprep.subr.mxu0 0.0
  %450 = vmatpush1.msra.mxu0 %v272
  %451 = vmatprep.subr.mxu0 0.0
  %452 = vmatpush1.msra.mxu0 %v273
  %453 = vmatprep.subr.mxu0 0.0
  %454 = vmatpush1.msra.mxu0 %v274
  %455 = vmatprep.subr.mxu0 0.0
  %456 = vmatpush1.msra.mxu0 %v275
  %457 = vmatprep.subr.mxu0 0.0
  %458 = vmatpush1.msra.mxu0 %v276
  %459 = vmatprep.subr.mxu0 0.0
  %460 = vmatpush1.msra.mxu0 %v277
  %461 = vmatprep.subr.mxu0 0.0
  %462 = vmatpush1.msra.mxu0 %v278
  %463 = vmatprep.subr.mxu0 0.0
  %464 = vmatpush1.msra.mxu0 %v279
  %465 = vmatprep.subr.mxu0 0.0
  %466 = vmatpush1.msra.mxu0 0.0
  %467 = vmatprep.subr.mxu0 0.0
  %468 = vmatpush1.msra.mxu0 0.0
  %469 = vmatprep.subr.mxu0 0.0
  %470 = vmatpush1.msra.mxu0 0.0
  %471 = vmatprep.subr.mxu0 0.0
  %472 = vmatpush1.msra.mxu0 0.0
  %473 = vmatprep.subr.mxu0 0.0
  %474 = vmatpush1.msra.mxu0 0.0
  %475 = vmatprep.subr.mxu0 0.0
  %476 = vmatpush1.msra.mxu0 0.0
  %477 = vmatprep.subr.mxu0 0.0
  %478 = vmatpush1.msra.mxu0 0.0
  %479 = vmatprep.subr.mxu0 0.0
  %480 = vmatpush1.msra.mxu0 0.0
  %481 = vmatprep.subr.mxu0 0.0
  %482 = vmatpush1.msra.mxu0 0.0
  %483 = vmatprep.subr.mxu0 0.0
  %484 = vmatpush1.msra.mxu0 0.0
  %485 = vmatprep.subr.mxu0 0.0
  %486 = vmatpush1.msra.mxu0 0.0
  %487 = vmatprep.subr.mxu0 0.0
  %488 = vmatpush1.msra.mxu0 0.0
  %489 = vmatprep.subr.mxu0 0.0
  %490 = vmatpush1.msra.mxu0 0.0
  %491 = vmatprep.subr.mxu0 0.0
  %492 = vmatpush1.msra.mxu0 0.0
  %493 = vmatprep.subr.mxu0 0.0
  %494 = vmatpush1.msra.mxu0 0.0
  %495 = vmatprep.subr.mxu0 0.0
  %496 = vmatpush1.msra.mxu0 0.0
  %497 = vmatprep.mubr.f32.mxu0 0.0
  %498 = vmatmul.mubr.f32.gmra.mrb[0].mxu0 %v248
  %v499 = vpop.f32.mrb[0].mxu0
  %v500 = vadd.f32 %v355, %v499
  %v501 = vpop.f32.mrb[0].mxu0
  %502 = vmatprep.mubr.f32.mxu0 0.0
  %503 = vmatmul.mubr.f32.gmra.mrb[0].mxu0 %v249
  %v504 = vpop.f32.mrb[0].mxu0
  %v505 = vadd.f32 %v360, %v504
  %v506 = vpop.f32.mrb[0].mxu0
  %507 = vmatprep.mubr.f32.mxu0 0.0
  %508 = vmatmul.mubr.f32.gmra.mrb[0].mxu0 %v250
  %v509 = vpop.f32.mrb[0].mxu0
  %v510 = vadd.f32 %v365, %v509
  %v511 = vpop.f32.mrb[0].mxu0
  %512 = vmatprep.mubr.f32.mxu0 0.0
  %513 = vmatmul.mubr.f32.gmra.mrb[0].mxu0 %v251
  %v514 = vpop.f32.mrb[0].mxu0
  %v515 = vadd.f32 %v370, %v514
  %v516 = vpop.f32.mrb[0].mxu0
  %517 = vmatprep.mubr.f32.mxu0 0.0
  %518 = vmatmul.mubr.f32.gmra.mrb[0].mxu0 %v252
  %v519 = vpop.f32.mrb[0].mxu0
  %v520 = vadd.f32 %v375, %v519
  %v521 = vpop.f32.mrb[0].mxu0
  %522 = vmatprep.mubr.f32.mxu0 0.0
  %523 = vmatmul.mubr.f32.gmra.mrb[0].mxu0 %v253
  %v524 = vpop.f32.mrb[0].mxu0
  %v525 = vadd.f32 %v380, %v524
  %v526 = vpop.f32.mrb[0].mxu0
  %527 = vmatprep.mubr.f32.mxu0 0.0
  %528 = vmatmul.mubr.f32.gmra.mrb[0].mxu0 %v254
  %v529 = vpop.f32.mrb[0].mxu0
  %v530 = vadd.f32 %v385, %v529
  %v531 = vpop.f32.mrb[0].mxu0
  %532 = vmatprep.mubr.f32.mxu0 0.0
  %533 = vmatmul.mubr.f32.gmra.mrb[0].mxu0 %v255
  %v534 = vpop.f32.mrb[0].mxu0
  %v535 = vadd.f32 %v390, %v534
  %v536 = vpop.f32.mrb[0].mxu0
  %537 = vmatprep.mubr.f32.mxu0 0.0
  %538 = vmatmul.mubr.f32.gmra.mrb[0].mxu0 %v256
  %v539 = vpop.f32.mrb[0].mxu0
  %v540 = vadd.f32 %v395, %v539
  %v541 = vpop.f32.mrb[0].mxu0
  %542 = vmatprep.mubr.f32.mxu0 0.0
  %543 = vmatmul.mubr.f32.gmra.mrb[0].mxu0 %v257
  %v544 = vpop.f32.mrb[0].mxu0
  %v545 = vadd.f32 %v400, %v544
  %v546 = vpop.f32.mrb[0].mxu0
  %547 = vmatprep.mubr.f32.mxu0 0.0
  %548 = vmatmul.mubr.f32.gmra.mrb[0].mxu0 %v258
  %v549 = vpop.f32.mrb[0].mxu0
  %v550 = vadd.f32 %v405, %v549
  %v551 = vpop.f32.mrb[0].mxu0
  %552 = vmatprep.mubr.f32.mxu0 0.0
  %553 = vmatmul.mubr.f32.gmra.mrb[0].mxu0 %v259
  %v554 = vpop.f32.mrb[0].mxu0
  %v555 = vadd.f32 %v410, %v554
  %v556 = vpop.f32.mrb[0].mxu0
  %557 = vmatprep.mubr.f32.mxu0 0.0
  %558 = vmatmul.mubr.f32.gmra.mrb[0].mxu0 %v260
  %v559 = vpop.f32.mrb[0].mxu0
  %v560 = vadd.f32 %v415, %v559
  %v561 = vpop.f32.mrb[0].mxu0
  %562 = vmatprep.mubr.f32.mxu0 0.0
  %563 = vmatmul.mubr.f32.gmra.mrb[0].mxu0 %v261
  %v564 = vpop.f32.mrb[0].mxu0
  %v565 = vadd.f32 %v420, %v564
  %v566 = vpop.f32.mrb[0].mxu0
  %567 = vmatprep.mubr.f32.mxu0 0.0
  %568 = vmatmul.mubr.f32.gmra.mrb[0].mxu0 %v262
  %v569 = vpop.f32.mrb[0].mxu0
  %v570 = vadd.f32 %v425, %v569
  %v571 = vpop.f32.mrb[0].mxu0
  %572 = vmatprep.mubr.f32.mxu0 0.0
  %573 = vmatmul.mubr.f32.gmra.mrb[0].mxu0 %v263
  %v574 = vpop.f32.mrb[0].mxu0
  %v575 = vadd.f32 %v430, %v574
  %v576 = vpop.f32.mrb[0].mxu0
  %577 = vdwg.mxu0
  %v578 = vlaneseq
  %v579 = vshrl.u32 %v578, 7
  %v580 = vsub.s32 0, %v579
  %v581 = vrot.slane %v24, %v580
  %v582 = vadd.f32 %v500, %v581
  %v583 = vadd.f32 %v505, %v581
  %v584 = vadd.f32 %v510, %v581
  %v585 = vadd.f32 %v515, %v581
  %v586 = vadd.f32 %v520, %v581
  %v587 = vadd.f32 %v525, %v581
  %v588 = vadd.f32 %v530, %v581
  %v589 = vadd.f32 %v535, %v581
  %v590 = vadd.f32 %v540, %v581
  %v591 = vadd.f32 %v545, %v581
  %v592 = vadd.f32 %v550, %v581
  %v593 = vadd.f32 %v555, %v581
  %v594 = vadd.f32 %v560, %v581
  %v595 = vadd.f32 %v565, %v581
  %v596 = vadd.f32 %v570, %v581
  %v597 = vadd.f32 %v575, %v581
  %v598 = vmax.f32 %v582, 0.0
  %v599 = vmax.f32 %v583, 0.0
  %v600 = vmax.f32 %v584, 0.0
  %v601 = vmax.f32 %v585, 0.0
  %v602 = vmax.f32 %v586, 0.0
  %v603 = vmax.f32 %v587, 0.0
  %v604 = vmax.f32 %v588, 0.0
  %v605 = vmax.f32 %v589, 0.0
  %v606 = vmax.f32 %v590, 0.0
  %v607 = vmax.f32 %v591, 0.0
  %v608 = vmax.f32 %v592, 0.0
  %v609 = vmax.f32 %v593, 0.0
  %v610 = vmax.f32 %v594, 0.0
  %v611 = vmax.f32 %v595, 0.0
  %v612 = vmax.f32 %v596, 0.0
  %v613 = vmax.f32 %v597, 0.0
  %v614 = vld [vmem:[%s4] sm:$0xff]
  %v615 = vld [vmem:[%s4 + $0x8] sm:$0xff]
  %v616 = vld [vmem:[%s4 + $0x10] sm:$0xff]
  %v617 = vld [vmem:[%s4 + $0x18] sm:$0xff]
  %v618 = vld [vmem:[%s4 + $0x20] sm:$0xff]
  %v619 = vld [vmem:[%s4 + $0x28] sm:$0xff]
  %v620 = vld [vmem:[%s4 + $0x30] sm:$0xff]
  %v621 = vld [vmem:[%s4 + $0x38] sm:$0xff]
  %v623 = vsel %vm54, %v598, 0
  %v626 = vsel %vm54, %v599, 0
  %v629 = vsel %vm54, %v600, 0
  %v632 = vsel %vm54, %v601, 0
  %v635 = vsel %vm54, %v602, 0
  %v638 = vsel %vm54, %v603, 0
  %v641 = vsel %vm54, %v604, 0
  %v644 = vsel %vm54, %v605, 0
  %v647 = vsel %vm54, %v606, 0
  %v650 = vsel %vm54, %v607, 0
  %v653 = vsel %vm54, %v608, 0
  %v656 = vsel %vm54, %v609, 0
  %v659 = vsel %vm54, %v610, 0
  %v662 = vsel %vm54, %v611, 0
  %v665 = vsel %vm54, %v612, 0
  %v668 = vsel %vm54, %v613, 0
  %670 = vmatprep.subr.mxu0 0.0
  %671 = vmatpush1.msra.mxu0 %v614
  %672 = vmatprep.subr.mxu0 0.0
  %673 = vmatpush1.msra.mxu0 %v615
  %674 = vmatprep.subr.mxu0 0.0
  %675 = vmatpush1.msra.mxu0 %v616
  %676 = vmatprep.subr.mxu0 0.0
  %677 = vmatpush1.msra.mxu0 %v617
  %678 = vmatprep.subr.mxu0 0.0
  %679 = vmatpush1.msra.mxu0 %v618
  %680 = vmatprep.subr.mxu0 0.0
  %681 = vmatpush1.msra.mxu0 %v619
  %682 = vmatprep.subr.mxu0 0.0
  %683 = vmatpush1.msra.mxu0 %v620
  %684 = vmatprep.subr.mxu0 0.0
  %685 = vmatpush1.msra.mxu0 %v621
  %686 = vmatprep.subr.mxu0 0.0
  %687 = vmatpush1.msra.mxu0 0.0
  %688 = vmatprep.subr.mxu0 0.0
  %689 = vmatpush1.msra.mxu0 0.0
  %690 = vmatprep.subr.mxu0 0.0
  %691 = vmatpush1.msra.mxu0 0.0
  %692 = vmatprep.subr.mxu0 0.0
  %693 = vmatpush1.msra.mxu0 0.0
  %694 = vmatprep.subr.mxu0 0.0
  %695 = vmatpush1.msra.mxu0 0.0
  %696 = vmatprep.subr.mxu0 0.0
  %697 = vmatpush1.msra.mxu0 0.0
  %698 = vmatprep.subr.mxu0 0.0
  %699 = vmatpush1.msra.mxu0 0.0
  %700 = vmatprep.subr.mxu0 0.0
  %701 = vmatpush1.msra.mxu0 0.0
  %702 = vmatprep.subr.mxu0 0.0
  %703 = vmatpush1.msra.mxu0 0.0
  %704 = vmatprep.subr.mxu0 0.0
  %705 = vmatpush1.msra.mxu0 0.0
  %706 = vmatprep.subr.mxu0 0.0
  %707 = vmatpush1.msra.mxu0 0.0
  %708 = vmatprep.subr.mxu0 0.0
  %709 = vmatpush1.msra.mxu0 0.0
  %710 = vmatprep.subr.mxu0 0.0
  %711 = vmatpush1.msra.mxu0 0.0
  %712 = vmatprep.subr.mxu0 0.0
  %713 = vmatpush1.msra.mxu0 0.0
  %714 = vmatprep.subr.mxu0 0.0
  %715 = vmatpush1.msra.mxu0 0.0
  %716 = vmatprep.subr.mxu0 0.0
  %717 = vmatpush1.msra.mxu0 0.0
  %718 = vmatprep.subr.mxu0 0.0
  %719 = vmatpush1.msra.mxu0 0.0
  %720 = vmatprep.subr.mxu0 0.0
  %721 = vmatpush1.msra.mxu0 0.0
  %722 = vmatprep.subr.mxu0 0.0
  %723 = vmatpush1.msra.mxu0 0.0
  %724 = vmatprep.subr.mxu0 0.0
  %725 = vmatpush1.msra.mxu0 0.0
  %726 = vmatprep.subr.mxu0 0.0
  %727 = vmatpush1.msra.mxu0 0.0
  %728 = vmatprep.subr.mxu0 0.0
  %729 = vmatpush1.msra.mxu0 0.0
  %730 = vmatprep.subr.mxu0 0.0
  %731 = vmatpush1.msra.mxu0 0.0
  %732 = vmatprep.subr.mxu0 0.0
  %733 = vmatpush1.msra.mxu0 0.0
  %734 = vmatprep.mubr.f32.mxu0 0.0
  %735 = vmatmul.mubr.f32.gmra.mrb[0].mxu0 %v623
  %v736 = vpop.f32.mrb[0].mxu0
  %v737 = vadd.f32 0.0, %v736
  %v738 = vpop.f32.mrb[0].mxu0
  %739 = vmatprep.mubr.f32.mxu0 0.0
  %740 = vmatmul.mubr.f32.gmra.mrb[0].mxu0 %v626
  %v741 = vpop.f32.mrb[0].mxu0
  %v742 = vadd.f32 0.0, %v741
  %v743 = vpop.f32.mrb[0].mxu0
  %744 = vmatprep.mubr.f32.mxu0 0.0
  %745 = vmatmul.mubr.f32.gmra.mrb[0].mxu0 %v629
  %v746 = vpop.f32.mrb[0].mxu0
  %v747 = vadd.f32 0.0, %v746
  %v748 = vpop.f32.mrb[0].mxu0
  %749 = vmatprep.mubr.f32.mxu0 0.0
  %750 = vmatmul.mubr.f32.gmra.mrb[0].mxu0 %v632
  %v751 = vpop.f32.mrb[0].mxu0
  %v752 = vadd.f32 0.0, %v751
  %v753 = vpop.f32.mrb[0].mxu0
  %754 = vmatprep.mubr.f32.mxu0 0.0
  %755 = vmatmul.mubr.f32.gmra.mrb[0].mxu0 %v635
  %v756 = vpop.f32.mrb[0].mxu0
  %v757 = vadd.f32 0.0, %v756
  %v758 = vpop.f32.mrb[0].mxu0
  %759 = vmatprep.mubr.f32.mxu0 0.0
  %760 = vmatmul.mubr.f32.gmra.mrb[0].mxu0 %v638
  %v761 = vpop.f32.mrb[0].mxu0
  %v762 = vadd.f32 0.0, %v761
  %v763 = vpop.f32.mrb[0].mxu0
  %764 = vmatprep.mubr.f32.mxu0 0.0
  %765 = vmatmul.mubr.f32.gmra.mrb[0].mxu0 %v641
  %v766 = vpop.f32.mrb[0].mxu0
  %v767 = vadd.f32 0.0, %v766
  %v768 = vpop.f32.mrb[0].mxu0
  %769 = vmatprep.mubr.f32.mxu0 0.0
  %770 = vmatmul.mubr.f32.gmra.mrb[0].mxu0 %v644
  %v771 = vpop.f32.mrb[0].mxu0
  %v772 = vadd.f32 0.0, %v771
  %v773 = vpop.f32.mrb[0].mxu0
  %774 = vmatprep.mubr.f32.mxu0 0.0
  %775 = vmatmul.mubr.f32.gmra.mrb[0].mxu0 %v647
  %v776 = vpop.f32.mrb[0].mxu0
  %v777 = vadd.f32 0.0, %v776
  %v778 = vpop.f32.mrb[0].mxu0
  %779 = vmatprep.mubr.f32.mxu0 0.0
  %780 = vmatmul.mubr.f32.gmra.mrb[0].mxu0 %v650
  %v781 = vpop.f32.mrb[0].mxu0
  %v782 = vadd.f32 0.0, %v781
  %v783 = vpop.f32.mrb[0].mxu0
  %784 = vmatprep.mubr.f32.mxu0 0.0
  %785 = vmatmul.mubr.f32.gmra.mrb[0].mxu0 %v653
  %v786 = vpop.f32.mrb[0].mxu0
  %v787 = vadd.f32 0.0, %v786
  %v788 = vpop.f32.mrb[0].mxu0
  %789 = vmatprep.mubr.f32.mxu0 0.0
  %790 = vmatmul.mubr.f32.gmra.mrb[0].mxu0 %v656
  %v791 = vpop.f32.mrb[0].mxu0
  %v792 = vadd.f32 0.0, %v791
  %v793 = vpop.f32.mrb[0].mxu0
  %794 = vmatprep.mubr.f32.mxu0 0.0
  %795 = vmatmul.mubr.f32.gmra.mrb[0].mxu0 %v659
  %v796 = vpop.f32.mrb[0].mxu0
  %v797 = vadd.f32 0.0, %v796
  %v798 = vpop.f32.mrb[0].mxu0
  %799 = vmatprep.mubr.f32.mxu0 0.0
  %800 = vmatmul.mubr.f32.gmra.mrb[0].mxu0 %v662
  %v801 = vpop.f32.mrb[0].mxu0
  %v802 = vadd.f32 0.0, %v801
  %v803 = vpop.f32.mrb[0].mxu0
  %804 = vmatprep.mubr.f32.mxu0 0.0
  %805 = vmatmul.mubr.f32.gmra.mrb[0].mxu0 %v665
  %v806 = vpop.f32.mrb[0].mxu0
  %v807 = vadd.f32 0.0, %v806
  %v808 = vpop.f32.mrb[0].mxu0
  %809 = vmatprep.mubr.f32.mxu0 0.0
  %810 = vmatmul.mubr.f32.gmra.mrb[0].mxu0 %v668
  %v811 = vpop.f32.mrb[0].mxu0
  %v812 = vadd.f32 0.0, %v811
  %v813 = vpop.f32.mrb[0].mxu0
  %814 = vdwg.mxu0
  %815 = vxpose.xlu0.b32.start [1/16] %v737, 128
  %816 = vxpose.xlu0.b32.cont [2/16] %v742, 128
  %817 = vxpose.xlu0.b32.cont [3/16] %v747, 128
  %818 = vxpose.xlu0.b32.cont [4/16] %v752, 128
  %819 = vxpose.xlu0.b32.cont [5/16] %v757, 128
  %820 = vxpose.xlu0.b32.cont [6/16] %v762, 128
  %821 = vxpose.xlu0.b32.cont [7/16] %v767, 128
  %822 = vxpose.xlu0.b32.cont [8/16] %v772, 128
  %823 = vxpose.xlu0.b32.cont [9/16] %v777, 128
  %824 = vxpose.xlu0.b32.cont [10/16] %v782, 128
  %825 = vxpose.xlu0.b32.cont [11/16] %v787, 128
  %826 = vxpose.xlu0.b32.cont [12/16] %v792, 128
  %827 = vxpose.xlu0.b32.cont [13/16] %v797, 128
  %828 = vxpose.xlu0.b32.cont [14/16] %v802, 128
  %829 = vxpose.xlu0.b32.cont [15/16] %v807, 128
  %830 = vxpose.xlu0.b32.end [16/16] %v812, 128
  %v831 = vpop.trf.xlu0
  %v832 = vpop.trf.xlu0
  %v833 = vpop.trf.xlu0
  %v834 = vpop.trf.xlu0
  %v835 = vpop.trf.xlu0
  %v836 = vpop.trf.xlu0
  %v837 = vpop.trf.xlu0
  %v838 = vpop.trf.xlu0
  %v839 = vpop.trf.xlu0
  %v840 = vpop.trf.xlu0
  %v841 = vpop.trf.xlu0
  %v842 = vpop.trf.xlu0
  %v843 = vpop.trf.xlu0
  %v844 = vpop.trf.xlu0
  %v845 = vpop.trf.xlu0
  %v846 = vpop.trf.xlu0
  %v847 = vadd.f32 %v831, %v25
  %848 = vst [vmem:[%s6] sm:$0x1] %v847
  // Predicated region
  $region26: #{critic_forward.1} parent=0 // pred_check
    _
  $region27: #{critic_forward.1} parent=0 // pred_check_branch
    %850 = sbr.rel (0) target = $region29
  $region28: #{critic_forward.1} parent=0 // pred_region
    _
  $region29: #{critic_forward.1} parent=0 // pred_fallthru
    _
  // Predicated region
  $region30: #{critic_forward.1} parent=0 // pred_check
    _
  $region31: #{critic_forward.1} parent=0 // pred_check_branch
    %852 = sbr.rel (0) target = $region33
  $region32: #{critic_forward.1} parent=0 // pred_region
    _
  $region33: #{critic_forward.1} parent=0 // pred_fallthru
    _

</llo_original>
